<compile_context>
chip_gen: v7x
topology: tpu7x:2x2x1
jax: 0.10.0
libtpu: 0.0.40
codegen_flags: <defaults>
</compile_context>

<pallas_src>
import math
import functools

import jax
import jax.numpy as jnp
from jax import lax
from jax.experimental import pallas as pl
from jax.experimental.pallas import tpu as pltpu


def _pick_tile(dim, candidates):
    """Largest candidate tile that evenly divides `dim`; else fall back to the full dim."""
    for c in candidates:
        if dim >= c and dim % c == 0:
            return c
    return dim


# ----------------------------------------------------------------------------
# Kernel 1: tiled dense projection  out = x @ W + b   (Conv1D / F.linear)
# ----------------------------------------------------------------------------
def _linear_kernel(x_ref, w_ref, b_ref, o_ref, acc_ref):
    k = pl.program_id(2)

    @pl.when(k == 0)
    def _init():
        acc_ref[...] = jnp.zeros_like(acc_ref)

    acc_ref[...] += jnp.dot(x_ref[...], w_ref[...],
                            preferred_element_type=jnp.float32)

    @pl.when(k == pl.num_programs(2) - 1)
    def _finalize():
        o_ref[...] = (acc_ref[...] + b_ref[...]).astype(o_ref.dtype)


def pallas_linear(x2d, w, b):
    """x2d: (M, K) f32, w: (K, N) f32, b: (N,) f32  ->  (M, N) f32 (bf16 MXU, f32 acc)."""
    M, K = x2d.shape
    N = w.shape[1]
    tm = _pick_tile(M, (256, 128))
    tn = _pick_tile(N, (256, 128))
    tk = _pick_tile(K, (512, 256, 128))

    xb = x2d.astype(jnp.bfloat16)
    wb = w.astype(jnp.bfloat16)
    bf = b.reshape(1, N).astype(jnp.float32)

    cost = pl.CostEstimate(
        flops=2 * M * N * K,
        transcendentals=0,
        bytes_accessed=M * K * 2 + K * N * 2 + M * N * 4 + N * 4,
    )
    return pl.pallas_call(
        _linear_kernel,
        out_shape=jax.ShapeDtypeStruct((M, N), jnp.float32),
        grid_spec=pltpu.PrefetchScalarGridSpec(
            num_scalar_prefetch=0,
            grid=(M // tm, N // tn, K // tk),
            in_specs=[
                pl.BlockSpec((tm, tk), lambda i, j, k: (i, k)),
                pl.BlockSpec((tk, tn), lambda i, j, k: (k, j)),
                pl.BlockSpec((1, tn), lambda i, j, k: (0, j)),
            ],
            out_specs=pl.BlockSpec((tm, tn), lambda i, j, k: (i, j)),
            scratch_shapes=[pltpu.VMEM((tm, tn), jnp.float32)],
        ),
        compiler_params=pltpu.CompilerParams(
            dimension_semantics=("parallel", "parallel", "arbitrary"),
            vmem_limit_bytes=48 * 1024 * 1024,
        ),
        cost_estimate=cost,
    )(xb, wb, bf)


# ----------------------------------------------------------------------------
# Kernel 2: flash-style causal attention, grid = (B*H, T//tq, T//tkv)
# ----------------------------------------------------------------------------
def _flash_attn_kernel(q_ref, k_ref, v_ref, o_ref, m_sc, l_sc, acc_sc, *, sm_scale):
    qi = pl.program_id(1)
    ki = pl.program_id(2)
    tq = q_ref.shape[1]
    tkv = k_ref.shape[1]

    @pl.when(ki == 0)
    def _init():
        m_sc[...] = jnp.full(m_sc.shape, -jnp.inf, dtype=m_sc.dtype)
        l_sc[...] = jnp.zeros_like(l_sc)
        acc_sc[...] = jnp.zeros_like(acc_sc)

    # Causal block skip: a KV block contributes iff its first key position is
    # <= the last query position of this Q block.
    @pl.when(ki * tkv <= qi * tq + (tq - 1))
    def _compute():
        # fold 1/sqrt(hd) into q (tq*hd multiplies instead of tq*tkv divides)
        q = (q_ref[0] * sm_scale).astype(jnp.bfloat16)
        k = k_ref[0].astype(jnp.bfloat16)
        v = v_ref[0].astype(jnp.bfloat16)

        # q @ k^T without pre-transposing k: contract on the head dim.
        s = lax.dot_general(q, k, (((1,), (1,)), ((), ())),
                            preferred_element_type=jnp.float32)   # (tq, tkv)

        row = qi * tq + lax.broadcasted_iota(jnp.int32, (tq, tkv), 0)
        col = ki * tkv + lax.broadcasted_iota(jnp.int32, (tq, tkv), 1)
        s = jnp.where(col <= row, s, -1e10)

        m_prev = m_sc[...]
        m_new = jnp.maximum(m_prev, s.max(axis=-1, keepdims=True))
        alpha = jnp.exp(m_prev - m_new)
        p = jnp.exp(s - m_new)
        l_sc[...] = alpha * l_sc[...] + p.sum(axis=-1, keepdims=True)
        acc_sc[...] = alpha * acc_sc[...] + jnp.dot(
            p.astype(jnp.bfloat16), v, preferred_element_type=jnp.float32)
        m_sc[...] = m_new

    @pl.when(ki == pl.num_programs(2) - 1)
    def _finalize():
        o_ref[0] = (acc_sc[...] *
                    pl.reciprocal(l_sc[...], approx=True)).astype(o_ref.dtype)


def pallas_flash_attention(q, k, v, *, scale):
    """q, k, v: (B, H, T, hd) f32  ->  (B, H, T, hd) f32."""
    B, H, T, hd = q.shape
    BH = B * H
    sm_scale = (1.0 / math.sqrt(hd)) if scale else 1.0
    tq = _pick_tile(T, (256, 128))
    tkv = _pick_tile(T, (256, 128))

    qf = q.reshape(BH, T, hd)
    kf = k.reshape(BH, T, hd)
    vf = v.reshape(BH, T, hd)

    cost = pl.CostEstimate(
        flops=4 * BH * T * T * hd,
        transcendentals=BH * T * T,
        bytes_accessed=4 * BH * T * hd * 4,
    )
    out = pl.pallas_call(
        functools.partial(_flash_attn_kernel, sm_scale=sm_scale),
        out_shape=jax.ShapeDtypeStruct((BH, T, hd), jnp.float32),
        grid_spec=pltpu.PrefetchScalarGridSpec(
            num_scalar_prefetch=0,
            grid=(BH, T // tq, T // tkv),
            in_specs=[
                pl.BlockSpec((1, tq, hd), lambda bh, qi, ki: (bh, qi, 0)),
                pl.BlockSpec((1, tkv, hd), lambda bh, qi, ki: (bh, ki, 0)),
                pl.BlockSpec((1, tkv, hd), lambda bh, qi, ki: (bh, ki, 0)),
            ],
            out_specs=pl.BlockSpec((1, tq, hd), lambda bh, qi, ki: (bh, qi, 0)),
            scratch_shapes=[
                pltpu.VMEM((tq, 1), jnp.float32),    # running max  m
                pltpu.VMEM((tq, 1), jnp.float32),    # running sum  l
                pltpu.VMEM((tq, hd), jnp.float32),   # accumulator
            ],
        ),
        compiler_params=pltpu.CompilerParams(
            dimension_semantics=("parallel", "parallel", "arbitrary"),
            vmem_limit_bytes=48 * 1024 * 1024,
        ),
        cost_estimate=cost,
    )(qf, kf, vf)
    return out.reshape(B, H, T, hd)


# ----------------------------------------------------------------------------
# Full forward of Attention (mult_lora_r > 0 branch, no KV cache)
# ----------------------------------------------------------------------------
def attention_forward(x, params, *, n_head, scale=True):
    B, T, nx = x.shape
    n_state = nx
    hd = n_state // n_head

    W = params["c_attn_w"]        # (nx, 3*n_state)  Conv1D column layout (x @ W)
    bias = params["c_attn_b"]     # (3*n_state,)
    scaling = params["lora_scaling"]

    W_q_raw = W[:, :n_state]
    W_k_raw = W[:, n_state:2 * n_state]
    W_v_raw = W[:, 2 * n_state:3 * n_state]

    # Multiplicative-LoRA adaptation kept in the column layout (no transposes):
    #   (W_q^T + s * B @ A @ W_q^T)^T  ==  W_q_raw + s * W_q_raw @ A^T @ B^T
    aWq = W_q_raw + scaling * (W_q_raw @ params["lora_A_q"].T @ params["lora_B_q"].T)
    aWv = W_v_raw + scaling * (W_v_raw @ params["lora_A_v"].T @ params["lora_B_v"].T)

    # TODO(synk): for frozen weights, precompute w_qkv once per step instead of per call.
    w_qkv = jnp.concatenate([aWq, W_k_raw, aWv], axis=1)            # (nx, 3*n_state)
    qkv = pallas_linear(x.reshape(B * T, nx), w_qkv, bias)          # (B*T, 3*n_state)

    # single transpose replaces the three split_heads permutes:
    # (B, T, 3, H, hd) -> (3, B, H, T, hd)
    qkv = qkv.reshape(B, T, 3, n_head, hd).transpose(2, 0, 3, 1, 4)
    q, k, v = qkv[0], qkv[1], qkv[2]                                # (B, H, T, hd) each

    # present == stack(key.transpose(-2,-1), value) == stack in (B,H,T,hd) layout.
    present = jnp.stack([k, v])

    # TODO(synk): layer_past / len_past KV-cache scatter branches are not implemented;
    # this covers the layer_past=None training/prefill path.
    a = pallas_flash_attention(q, k, v, scale=scale)                # (B, H, T, hd)

    # merge_heads
    a = a.transpose(0, 2, 1, 3).reshape(B * T, n_state)

    out = pallas_linear(a, params["c_proj_w"], params["c_proj_b"]).reshape(B, T, nx)
    return out, present


# ----------------------------------------------------------------------------
# Pure-JAX f32 reference (same math as the PyTorch module) for correctness check
# ----------------------------------------------------------------------------
def attention_forward_ref(x, params, *, n_head, scale=True):
    B, T, nx = x.shape
    n_state = nx
    hd = n_state // n_head
    W, bias, scaling = params["c_attn_w"], params["c_attn_b"], params["lora_scaling"]
    W_q, W_k, W_v = (W[:, :n_state].T, W[:, n_state:2 * n_state].T, W[:, 2 * n_state:].T)
    b_q, b_k, b_v = (bias[:n_state], bias[n_state:2 * n_state], bias[2 * n_state:])
    aWq = W_q + scaling * (params["lora_B_q"] @ (params["lora_A_q"] @ W_q))
    aWv = W_v + scaling * (params["lora_B_v"] @ (params["lora_A_v"] @ W_v))
    query = x @ aWq.T + b_q
    key = x @ W_k.T + b_k
    value = x @ aWv.T + b_v
    q = query.reshape(B, T, n_head, hd).transpose(0, 2, 1, 3)
    k = key.reshape(B, T, n_head, hd).transpose(0, 2, 3, 1)
    v = value.reshape(B, T, n_head, hd).transpose(0, 2, 1, 3)
    w = q @ k
    if scale:
        w = w / math.sqrt(hd)
    m = jnp.tril(jnp.ones((T, T), jnp.float32))
    w = w * m - 1e10 * (1.0 - m)
    w = jax.nn.softmax(w, axis=-1)
    a = (w @ v).transpose(0, 2, 1, 3).reshape(B, T, n_state)
    out = a @ params["c_proj_w"] + params["c_proj_b"]
    present = jnp.stack([jnp.swapaxes(k, -2, -1), v])
    return out, present


# ----------------------------------------------------------------------------
if __name__ == "__main__":
    # small config consistent with the module
    B, T, nx = 2, 8, 32          # batch, seq (= n_ctx), hidden
    n_head = 4
    lora_r = 4
    lora_alpha = 8
    scale = True

    root = jax.random.PRNGKey(0)
    k_attn, k_proj, k_bq, k_bv, k_x = jax.random.split(root, 5)

    bound = 1.0 / math.sqrt(lora_r)  # kaiming_uniform(a=sqrt(5)) on (n_state, r): fan_in = r
    params = {
        "c_attn_w": 0.02 * jax.random.normal(k_attn, (nx, 3 * nx), jnp.float32),
        "c_attn_b": jnp.zeros((3 * nx,), jnp.float32),
        "c_proj_w": 0.02 * jax.random.normal(k_proj, (nx, nx), jnp.float32),
        "c_proj_b": jnp.zeros((nx,), jnp.float32),
        # faithful to __init__: lora_A_* are new_zeros, lora_B_* kaiming-uniform
        "lora_A_q": jnp.zeros((lora_r, nx), jnp.float32),
        "lora_A_v": jnp.zeros((lora_r, nx), jnp.float32),
        "lora_B_q": jax.random.uniform(k_bq, (nx, lora_r), jnp.float32, -bound, bound),
        "lora_B_v": jax.random.uniform(k_bv, (nx, lora_r), jnp.float32, -bound, bound),
        "lora_scaling": jnp.float32(lora_alpha / lora_r),
    }

    x = jax.random.normal(k_x, (B, T, nx), jnp.float32)

    out, present = attention_forward(x, params, n_head=n_head, scale=scale)
    out = jax.block_until_ready(out)
    present = jax.block_until_ready(present)

    out_ref, present_ref = attention_forward_ref(x, params, n_head=n_head, scale=scale)

    assert out.shape == (B, T, nx)
    assert present.shape == (2, B, n_head, T, nx // n_head)
    # bf16 MXU operands + f32 accumulation: compare to f32 reference with a bf16 tolerance.
    assert jnp.allclose(out, out_ref, atol=2e-2, rtol=2e-2), "output mismatch vs reference"
    assert jnp.allclose(present, present_ref, atol=2e-2, rtol=2e-2), "present mismatch vs reference"

    print("KERNEL_OK")
</pallas_src>

<mosaic_0001>
module attributes {stable_mosaic.version = 11 : i64} {
  func.func @_linear_kernel(%arg0: i32, %arg1: i32, %arg2: i32, %arg3: memref<16x32xbf16, #tpu.memory_space<vmem>>, %arg4: memref<32x96xbf16, #tpu.memory_space<vmem>>, %arg5: memref<1x96xf32, #tpu.memory_space<vmem>>, %arg6: memref<16x96xf32, #tpu.memory_space<vmem>>, %arg7: memref<16x96xf32, #tpu.memory_space<vmem>>) attributes {dimension_semantics = [#tpu.dimension_semantics<parallel>, #tpu.dimension_semantics<parallel>, #tpu.dimension_semantics<arbitrary>], iteration_bounds = array<i64: 1, 1, 1>, scalar_prefetch = 0 : i64, scratch_operands = 1 : i64, tpu.core_type = #tpu.core_type<tc>, window_params = [{transform_indices = @transform_0, window_bounds = array<i64: 16, 32>}, {transform_indices = @transform_1, window_bounds = array<i64: 32, 96>}, {transform_indices = @transform_2, window_bounds = array<i64: 1, 96>}, {transform_indices = @transform_3, window_bounds = array<i64: 16, 96>}]} {
    %c0_i32 = arith.constant 0 : i32
    %0 = arith.cmpi eq, %arg2, %c0_i32 : i32
    %1 = arith.extui %0 : i1 to i32
    %c0_i32_0 = arith.constant 0 : i32
    %2 = arith.cmpi ne, %1, %c0_i32_0 : i32
    scf.if %2 {
      %cst_10 = arith.constant 0.000000e+00 : f32
      %12 = vector.broadcast %cst_10 : f32 to vector<16x96xf32>
      %c0_11 = arith.constant 0 : index
      %c0_12 = arith.constant 0 : index
      %13 = vector.load %arg7[%c0_11, %c0_12] : memref<16x96xf32, #tpu.memory_space<vmem>>, vector<16x96xf32>
      tpu.vector_store %arg7[%c0_11, %c0_12], %12 {strides = array<i32>} : memref<16x96xf32, #tpu.memory_space<vmem>>, vector<16x96xf32>,
    } else {
    }
    %c0 = arith.constant 0 : index
    %c0_1 = arith.constant 0 : index
    %3 = vector.load %arg7[%c0, %c0_1] : memref<16x96xf32, #tpu.memory_space<vmem>>, vector<16x96xf32>
    %c0_2 = arith.constant 0 : index
    %c0_3 = arith.constant 0 : index
    %4 = vector.load %arg3[%c0_2, %c0_3] : memref<16x32xbf16, #tpu.memory_space<vmem>>, vector<16x32xbf16>
    %c0_4 = arith.constant 0 : index
    %c0_5 = arith.constant 0 : index
    %5 = vector.load %arg4[%c0_4, %c0_5] : memref<32x96xbf16, #tpu.memory_space<vmem>>, vector<32x96xbf16>
    %cst = arith.constant dense<0.000000e+00> : vector<16x96xf32>
    %6 = tpu.matmul %4, %5, %cst {dimension_numbers = #tpu.dot_dimension_numbers<[1], [0], [0], [1], [0, 0, 1, 1], [], []>} : vector<16x32xbf16>, vector<32x96xbf16>, vector<16x96xf32> -> vector<16x96xf32>
    %7 = arith.addf %3, %6 : vector<16x96xf32>
    %c0_6 = arith.constant 0 : index
    %c0_7 = arith.constant 0 : index
    %8 = vector.load %arg7[%c0_6, %c0_7] : memref<16x96xf32, #tpu.memory_space<vmem>>, vector<16x96xf32>
    tpu.vector_store %arg7[%c0_6, %c0_7], %7 {strides = array<i32>} : memref<16x96xf32, #tpu.memory_space<vmem>>, vector<16x96xf32>,
    %c0_i32_8 = arith.constant 0 : i32
    %9 = arith.cmpi eq, %arg2, %c0_i32_8 : i32
    %10 = arith.extui %9 : i1 to i32
    %c0_i32_9 = arith.constant 0 : i32
    %11 = arith.cmpi ne, %10, %c0_i32_9 : i32
    scf.if %11 {
      %c0_10 = arith.constant 0 : index
      %c0_11 = arith.constant 0 : index
      %12 = vector.load %arg7[%c0_10, %c0_11] : memref<16x96xf32, #tpu.memory_space<vmem>>, vector<16x96xf32>
      %c0_12 = arith.constant 0 : index
      %c0_13 = arith.constant 0 : index
      %13 = vector.load %arg5[%c0_12, %c0_13] : memref<1x96xf32, #tpu.memory_space<vmem>>, vector<1x96xf32>
      %14 = vector.broadcast %13 : vector<1x96xf32> to vector<16x96xf32>
      %15 = arith.addf %12, %14 : vector<16x96xf32>
      %c0_14 = arith.constant 0 : index
      %c0_15 = arith.constant 0 : index
      %16 = vector.load %arg6[%c0_14, %c0_15] : memref<16x96xf32, #tpu.memory_space<vmem>>, vector<16x96xf32>
      tpu.vector_store %arg6[%c0_14, %c0_15], %15 {strides = array<i32>} : memref<16x96xf32, #tpu.memory_space<vmem>>, vector<16x96xf32>,
    } else {
    }
    return
  }
  func.func @transform_0(%arg0: i32, %arg1: i32, %arg2: i32) -> (i32, i32) {
    %c0_i32 = arith.constant 0 : i32
    return %arg0, %arg2 : i32, i32
  }
  func.func @transform_1(%arg0: i32, %arg1: i32, %arg2: i32) -> (i32, i32) {
    %c0_i32 = arith.constant 0 : i32
    return %arg2, %arg1 : i32, i32
  }
  func.func @transform_2(%arg0: i32, %arg1: i32, %arg2: i32) -> (i32, i32) {
    %c0_i32 = arith.constant 0 : i32
    %c0_i32_0 = arith.constant 0 : i32
    return %c0_i32, %arg1 : i32, i32
  }
  func.func @transform_3(%arg0: i32, %arg1: i32, %arg2: i32) -> (i32, i32) {
    %c0_i32 = arith.constant 0 : i32
    return %arg0, %arg1 : i32, i32
  }
}

</mosaic_0001>

<llo_original>
// kernel: tpu_custom_call.1
$region0: #{tpu_custom_call.1}
  #allocation0 [shape = 'u32[]', space=smem, size = 0x4, offset = 0x4, fixed_abs, tag = 'smem constant byte address 0x4 - core index']
  #allocation1 [shape = 'u32[144,128]{1,0:T(1,128)}', space=vmem, size = 0x12000, scoped, tag = 'internal scratch']
  #allocation2 [shape = 'f32[16,96]{1,0:T(8,128)}', space=vmem, size = 0x2000, scoped, tag = 'scratch operand']
  %s0 = inlined_call_operand.hbm [shape: bf16[16,32], index: 0, kind: input, shape index: {}]
  %s1 = inlined_call_operand.hbm [shape: bf16[32,96], index: 1, kind: input, shape index: {}]
  %s2 = inlined_call_operand.vmem [shape: f32[1,96], index: 2, kind: input, shape index: {}]
  %s3 = inlined_call_operand.hbm [shape: f32[16,96], index: 3, kind: output, shape index: {}]
  %s4 = sld [smem:[#allocation0]]
  $region38: #{tpu_custom_call.1} parent=0
    _
  %s6 = ssub.s32 1, %s4
  %s7 = scalar_select 0, %s6, %s4
  $region1: #{tpu_custom_call.1} parent=0
    #allocation3 [shape = 'u8[4096]{0}', space=vmem, size = 0x1000, scoped, tag = 'input window, operand 0, single buffered']
    #allocation4 [shape = 's32[1]{0}', space=sflag, size = 0x4, scoped, tag = 'scoped memory for tpu_custom_call.1']
    #allocation5 [shape = 's32[1]{0}', space=sflag, size = 0x4, scoped, tag = 'scoped memory for tpu_custom_call.1']
    #allocation6 [shape = 'u8[8192]{0}', space=vmem, size = 0x2000, scoped, tag = 'input window, operand 1, single buffered']
    #allocation7 [shape = 's32[1]{0}', space=sflag, size = 0x4, scoped, tag = 'scoped memory for tpu_custom_call.1']
    #allocation8 [shape = 'u8[8192]{0}', space=vmem, size = 0x2000, scoped, tag = 'output window, operand 0, single buffered']
    %8 = vsyncpa [#allocation4], 0
    %9 = vsyncpa [#allocation7], 0
    %10 = vsyncpa [#allocation5], 0
    // Predicated region
    $region2: #{tpu_custom_call.1} parent=1 // pred_check
      _
    $region3: #{tpu_custom_call.1} parent=1 // pred_check_branch
      %12 = sbr.rel (0) target = $region5
    $region4: #{tpu_custom_call.1} parent=1 // pred_region
      %s14 = ssub.s32 128, 128
      %15 = vsyncadd [#allocation4], %s14
      %s16 = sshll.u32 [#allocation3], 4
      %s17 = int_to_ptr.vmem [resolvable:$true] %s16
      %22 = dma.hbm_to_vmem [thread:$0]  %s0, 128, %s17, [#allocation4], 64, 64, 4
    $region5: #{tpu_custom_call.1} parent=1 // pred_fallthru
      _
    // Predicated region
    $region6: #{tpu_custom_call.1} parent=1 // pred_check
      _
    $region7: #{tpu_custom_call.1} parent=1 // pred_check_branch
      %24 = sbr.rel (0) target = $region9
    $region8: #{tpu_custom_call.1} parent=1 // pred_region
      %s26 = ssub.s32 256, 256
      %27 = vsyncadd [#allocation7], %s26
      %s28 = sshll.u32 [#allocation6], 4
      %s29 = int_to_ptr.vmem [resolvable:$true] %s28
      %34 = dma.hbm_to_vmem [thread:$0]  %s1, 256, %s29, [#allocation7], 64, 64, 4
    $region9: #{tpu_custom_call.1} parent=1 // pred_fallthru
      _
    // Predicated region
    $region10: #{tpu_custom_call.1} parent=1 // pred_check
      _
    $region11: #{tpu_custom_call.1} parent=1 // pred_check_branch
      %36 = sbr.rel (0) target = $region13
    $region12: #{tpu_custom_call.1} parent=1 // pred_region
      _
    $region13: #{tpu_custom_call.1} parent=1 // pred_fallthru
      _
    // Predicated region
    $region14: #{tpu_custom_call.1} parent=1 // pred_check
      _
    $region15: #{tpu_custom_call.1} parent=1 // pred_check_branch
      %38 = sbr.rel (0) target = $region17
    $region16: #{tpu_custom_call.1} parent=1 // pred_region
      %39 = dma.done [#allocation4], 128
    $region17: #{tpu_custom_call.1} parent=1 // pred_fallthru
      _
    // Predicated region
    $region18: #{tpu_custom_call.1} parent=1 // pred_check
      _
    $region19: #{tpu_custom_call.1} parent=1 // pred_check_branch
      %41 = sbr.rel (0) target = $region21
    $region20: #{tpu_custom_call.1} parent=1 // pred_region
      %42 = dma.done [#allocation7], 256
    $region21: #{tpu_custom_call.1} parent=1 // pred_fallthru
      _
    %p44 = scmp.eq.s32.totalorder 0, 0
    // Predicated region
    $region22: #{tpu_custom_call.1} parent=1 // pred_check
      %p45 = pneg %p44
    $region23: #{tpu_custom_call.1} parent=1 // pred_check_branch
      %47 = sbr.rel (%p45) target = $region25
    $region24: #{tpu_custom_call.1} parent=1 // pred_region
      %vm48 = vcmask 785408
      %49 = vst.msk [vmem:[#allocation2] sm:$0xff] %vm48, 0.0
      %50 = vst.msk [vmem:[#allocation2 + $0x8] sm:$0xff] %vm48, 0.0
    $region25: #{tpu_custom_call.1} parent=1 // pred_fallthru
      _
    %v51 = vld [vmem:[#allocation2] sm:$0xff]
    %v52 = vld [vmem:[#allocation2 + $0x8] sm:$0xff]
    %v53 = vld [vmem:[#allocation3] sm:$0xf]
    %v54 = vld [vmem:[#allocation3 + $0x4] sm:$0xf]
    %v55 = vld [vmem:[#allocation6] sm:$0xf]
    %v56 = vld [vmem:[#allocation6 + $0x4] sm:$0xf]
    %v57 = vld [vmem:[#allocation6 + $0x8] sm:$0xf]
    %v58 = vld [vmem:[#allocation6 + $0xc] sm:$0xf]
    %v61 = vunpack.c.l.b16 %v53
    %v62 = vunpack.c.l.b16 %v54
    %v63 = vpack.c.b16 %v62, %v61
    %v68 = vunpack.c.l.b16 %v55
    %v69 = vunpack.c.l.b16 %v56
    %v70 = vunpack.c.l.b16 %v57
    %v71 = vunpack.c.l.b16 %v58
    %v72 = vpack.c.b16 %v69, %v68
    %v73 = vpack.c.b16 %v71, %v70
    %vm76 = vcmask 261120
    %v78 = vsel %vm76, %v63, 0
    %80 = vmatprep.subr.bf16.mxu0 0
    %81 = vmatpush1.bf16.msra.mxu0 %v72
    %82 = vmatprep.subr.bf16.mxu0 0
    %83 = vmatpush1.bf16.msra.mxu0 %v73
    %84 = vmatprep.subr.bf16.mxu0 0
    %85 = vmatpush1.bf16.msra.mxu0 0
    %86 = vmatprep.subr.bf16.mxu0 0
    %87 = vmatpush1.bf16.msra.mxu0 0
    %88 = vmatprep.subr.bf16.mxu0 0
    %89 = vmatpush1.bf16.msra.mxu0 0
    %90 = vmatprep.subr.bf16.mxu0 0
    %91 = vmatpush1.bf16.msra.mxu0 0
    %92 = vmatprep.subr.bf16.mxu0 0
    %93 = vmatpush1.bf16.msra.mxu0 0
    %94 = vmatprep.subr.bf16.mxu0 0
    %95 = vmatpush1.bf16.msra.mxu0 0
    %96 = vmatprep.subr.bf16.mxu0 0
    %97 = vmatpush1.bf16.msra.mxu0 0
    %98 = vmatprep.subr.bf16.mxu0 0
    %99 = vmatpush1.bf16.msra.mxu0 0
    %100 = vmatprep.subr.bf16.mxu0 0
    %101 = vmatpush1.bf16.msra.mxu0 0
    %102 = vmatprep.subr.bf16.mxu0 0
    %103 = vmatpush1.bf16.msra.mxu0 0
    %104 = vmatprep.subr.bf16.mxu0 0
    %105 = vmatpush1.bf16.msra.mxu0 0
    %106 = vmatprep.subr.bf16.mxu0 0
    %107 = vmatpush1.bf16.msra.mxu0 0
    %108 = vmatprep.subr.bf16.mxu0 0
    %109 = vmatpush1.bf16.msra.mxu0 0
    %110 = vmatprep.subr.bf16.mxu0 0
    %111 = vmatpush1.bf16.msra.mxu0 0
    %112 = vmatprep.mubr.bf16.mxu0 0
    %113 = vmatmul.mubr.bf16.gmra.mrb[0].mxu0 %v78
    %v114 = vpop.f32.mrb[0].mxu0
    %v115 = vadd.f32 0.0, %v114
    %v116 = vpop.f32.mrb[0].mxu0
    %v117 = vpop.f32.mrb[0].mxu0
    %v118 = vadd.f32 0.0, %v117
    %v119 = vpop.f32.mrb[0].mxu0
    %120 = vdwg.mxu0
    %v121 = vadd.f32 %v51, %v115
    %v122 = vadd.f32 %v52, %v118
    %vm123 = vcmask 785408
    %124 = vst.msk [vmem:[#allocation2] sm:$0xff] %vm123, %v121
    %125 = vst.msk [vmem:[#allocation2 + $0x8] sm:$0xff] %vm123, %v122
    // Predicated region
    $region26: #{tpu_custom_call.1} parent=1 // pred_check
      %p126 = pneg %p44
    $region27: #{tpu_custom_call.1} parent=1 // pred_check_branch
      %128 = sbr.rel (%p126) target = $region29
    $region28: #{tpu_custom_call.1} parent=1 // pred_region
      %v129 = vld [vmem:[#allocation2] sm:$0xff]
      %v130 = vld [vmem:[#allocation2 + $0x8] sm:$0xff]
      %v131 = vld [vmem:[%s2] sm:$0x1]
      %v133 = vlaneseq
      %v134 = vshrl.u32 %v133, 7
      %v135 = vsub.s32 0, %v134
      %v136 = vrot.slane %v131, %v135
      %v138 = vadd.f32 %v129, %v136
      %v139 = vadd.f32 %v130, %v136
      %140 = vst.msk [vmem:[#allocation8] sm:$0xff] %vm123, %v138
      %141 = vst.msk [vmem:[#allocation8 + $0x8] sm:$0xff] %vm123, %v139
    $region29: #{tpu_custom_call.1} parent=1 // pred_fallthru
      _
    // Predicated region
    $region30: #{tpu_custom_call.1} parent=1 // pred_check
      _
    $region31: #{tpu_custom_call.1} parent=1 // pred_check_branch
      %143 = sbr.rel (0) target = $region33
    $region32: #{tpu_custom_call.1} parent=1 // pred_region
      %s145 = ssub.s32 256, 256
      %146 = vsyncadd [#allocation5], %s145
      %s147 = sshll.u32 [#allocation8], 4
      %s148 = int_to_ptr.vmem [resolvable:$true] %s147
      %153 = dma.vmem_to_hbm [thread:$0]  %s148, 256, %s3, [#allocation5], 128, 128, 8
    $region33: #{tpu_custom_call.1} parent=1 // pred_fallthru
      _
    // Predicated region
    $region34: #{tpu_custom_call.1} parent=1 // pred_check
      _
    $region35: #{tpu_custom_call.1} parent=1 // pred_check_branch
      %155 = sbr.rel (0) target = $region37
    $region36: #{tpu_custom_call.1} parent=1 // pred_region
      %156 = dma.done [#allocation5], 256
    $region37: #{tpu_custom_call.1} parent=1 // pred_fallthru
      _
    %157 = vsyncpa [#allocation4], 1
    %158 = vsyncpa [#allocation7], 1
    %159 = vsyncpa [#allocation5], 1

</llo_original>
